<compile_context>
chip_gen: v5e
topology: v5e:2x2
jax: 0.10.0
libtpu: 0.0.40
codegen_flags: <defaults>
</compile_context>

<pallas_src>
import functools
import math

import jax
import jax.numpy as jnp
from jax.experimental import pallas as pl
from jax.experimental.pallas import tpu as pltpu


def _round_up(x: int, m: int) -> int:
    return (x + m - 1) // m * m


def _char_cnn_kernel(idx_ref, tab_ref, bias_ref, o_ref, *, w_real):
    """One tile of words.

    idx_ref:  [TN, Wp]        int32 char ids (Wp >= w_real, padded ids hit
                              all-zero / non-existent table rows)
    tab_ref:  [Vpad, 3*Cpad]  folded tables [T0 | T1 | T2], each Cpad wide,
                              T_k[v, c] = sum_e emb[v, e] * conv_w[c, e, k]
    bias_ref: [1, Cpad]       conv bias (zero padded)
    o_ref:    [TN, Cpad]      relu(max_t conv(word)[t, :] + bias)
    """
    idx = idx_ref[...]                                  # [TN, Wp] int32
    tn, wp = idx.shape
    vpad, c3 = tab_ref.shape
    cpad = c3 // 3

    # 1-hot over the (padded) vocab axis.  Sentinel / padded ids either select
    # a zero table row or match nothing -> gathered taps are exactly zero.
    col = jax.lax.broadcasted_iota(jnp.int32, (tn, wp, vpad), 2)
    onehot = (col == idx[:, :, None]).astype(tab_ref.dtype)
    onehot = onehot.reshape(tn * wp, vpad)              # free sublane merge

    # Single MXU matmul: embedding gather + all three conv taps at once.
    # (one-hot is exact in bf16; f32 tables use Mosaic's multi-pass f32 matmul.)
    g = jnp.dot(onehot, tab_ref[...], preferred_element_type=jnp.float32)
    g = g.reshape(tn, wp, c3)                           # [TN, Wp, 3*Cpad]

    # Combine taps with shifted adds along W.  conv[t] = T0[x[t-1]] + T1[x[t]]
    # + T2[x[t+1]]; the zero rows prepended/appended reproduce Conv1d padding.
    zero = jnp.zeros((tn, 1, cpad), jnp.float32)
    left = jnp.concatenate([zero, g[:, : wp - 1, 0:cpad]], axis=1)
    right = jnp.concatenate([g[:, 1:, 2 * cpad:], zero], axis=1)
    conv = g[:, :, cpad:2 * cpad] + left + right        # [TN, Wp, Cpad]

    if wp != w_real:
        # Padded word positions could pick up a neighbour tap from the last
        # real char -> mask them out of the max-pool.
        pos = jax.lax.broadcasted_iota(jnp.int32, (tn, wp, 1), 1)
        conv = jnp.where(pos < w_real, conv, jnp.float32(-1e30))

    pooled = jnp.max(conv, axis=1)                      # [TN, Cpad]
    o_ref[...] = jnp.maximum(pooled + bias_ref[...], 0.0)


def char_cnn_forward(x_idx, emb_table, conv_weight, conv_bias, *,
                     tile_n=None, table_dtype=jnp.bfloat16):
    """
    x_idx:       int32 [B, S, W]   character indices
    emb_table:   f32   [V, E]      embedding weights (padding_idx=0 only affects
                                   gradients in PyTorch; init_weight() re-inits
                                   the row, so it is used as-is)
    conv_weight: f32   [C, E, 3]   PyTorch Conv1d weight layout
    conv_bias:   f32   [C]
    table_dtype: MXU operand dtype for the folded table / one-hot.  bf16 is the
                 native MXU dtype on v5e/v6e/v7x; use jnp.float32 for ~1e-5
                 parity with an f32 reference.
    returns:     f32   [B, S, C]
    """
    B, S, W = x_idx.shape
    V, E = emb_table.shape
    C = conv_weight.shape[0]
    N = B * S
    hi = jax.lax.Precision.HIGHEST

    # TODO(synk): nn.Dropout(p=0.5) is stochastic in train mode; implemented as
    # identity (eval-mode semantics).

    Wp = _round_up(max(W, 8), 8)          # sublane-aligned word length
    Vpad = _round_up(V, 128)              # lane-aligned contraction dim
    Cpad = _round_up(C, 128)              # lane-dense output store

    # Fold Embedding -> Conv1d (both linear, so exact) into per-tap tables,
    # zero-padded and stacked along the channel axis: [Vpad, 3*Cpad].
    emb = emb_table.astype(jnp.float32)
    taps = jnp.transpose(conv_weight, (2, 1, 0)).astype(jnp.float32)   # [3, E, C]
    tab = jnp.concatenate(
        [jnp.pad(jnp.dot(emb, taps[k], precision=hi),
                 ((0, Vpad - V), (0, Cpad - C))) for k in range(3)],
        axis=1,
    ).astype(table_dtype)                                              # [Vpad, 3Cpad]
    bias = jnp.pad(conv_bias.astype(jnp.float32), (0, Cpad - C)).reshape(1, Cpad)

    idx = x_idx.reshape(N, W).astype(jnp.int32)
    if Wp != W:
        # Sentinel id V selects an all-zero table row (or matches nothing when
        # V == Vpad) -> padded positions contribute zero taps.
        idx = jnp.pad(idx, ((0, 0), (0, Wp - W)), constant_values=V)

    # Tile selection: multiple of 8 rows, sized so the per-step transients
    # (one-hot + gathered taps + combine temporaries) stay ~<= 24 MiB.
    dt_bytes = jnp.dtype(table_dtype).itemsize
    if tile_n is None:
        per_word = Wp * (Vpad * dt_bytes + 6 * Cpad * 4)
        tile_n = max(8, min(512, (24 * (1 << 20) // per_word) // 8 * 8))
    tile_n = max(8, min(_round_up(int(tile_n), 8), _round_up(N, 8)))
    n_pad = _round_up(N, tile_n)
    if n_pad != N:
        # Padded words are sliced off below; sentinel ids keep them all-zero.
        idx = jnp.pad(idx, ((0, n_pad - N), (0, 0)), constant_values=V)

    kernel = functools.partial(_char_cnn_kernel, w_real=W)

    out = pl.pallas_call(
        kernel,
        out_shape=jax.ShapeDtypeStruct((n_pad, Cpad), jnp.float32),
        grid=(n_pad // tile_n,),
        in_specs=[
            pl.BlockSpec((tile_n, Wp), lambda i: (i, 0)),        # char ids (streamed)
            pl.BlockSpec((Vpad, 3 * Cpad), lambda i: (0, 0)),    # folded table (resident)
            pl.BlockSpec((1, Cpad), lambda i: (0, 0)),           # bias (resident)
        ],
        out_specs=pl.BlockSpec((tile_n, Cpad), lambda i: (i, 0)),
        compiler_params=pltpu.CompilerParams(
            dimension_semantics=("parallel",),
            vmem_limit_bytes=48 * 1024 * 1024,   # fits v7x's 64 MiB/TC with headroom
        ),
    )(idx, tab, bias)

    return out[:N, :C].reshape(B, S, C)


def _reference_forward(x_idx, emb_table, conv_weight, conv_bias):
    """Plain-JAX reference mirroring the PyTorch forward (eval mode)."""
    B, S, W = x_idx.shape
    E = emb_table.shape[1]
    C = conv_weight.shape[0]
    hi = jax.lax.Precision.HIGHEST
    x = emb_table[x_idx].reshape(B * S, W, E)                        # [N, W, E]
    xp = jnp.pad(x, ((0, 0), (1, 1), (0, 0)))                        # pad W
    # conv[n, t, c] = sum_{k, e} xp[n, t + k, e] * conv_weight[c, e, k]
    conv = sum(
        jnp.einsum("nwe,ce->nwc", xp[:, k: k + W, :], conv_weight[:, :, k],
                   precision=hi)
        for k in range(3)
    ) + conv_bias[None, None, :]
    pooled = jnp.max(conv, axis=1)
    return jnp.maximum(pooled, 0.0).reshape(B, S, C)


def _run_case(key, *, V, E, C, B, S, W, tile_n, table_dtype, atol, rtol):
    k_idx, k_emb, k_w, k_b = jax.random.split(key, 4)

    # Character indices (0 is the padding index in the PyTorch module).
    x_idx = jax.random.randint(k_idx, (B, S, W), 0, V, dtype=jnp.int32)

    # Embedding init as in init_weight(): uniform(-sqrt(3/E), sqrt(3/E)).
    bnd = math.sqrt(3.0 / E)
    emb_table = jax.random.uniform(k_emb, (V, E), minval=-bnd, maxval=bnd,
                                   dtype=jnp.float32)

    # Conv1d params (synthetic deterministic init; PyTorch layout [C, E, 3]).
    wb = 1.0 / math.sqrt(E * 3)
    conv_weight = jax.random.uniform(k_w, (C, E, 3), minval=-wb, maxval=wb,
                                     dtype=jnp.float32)
    conv_bias = jax.random.uniform(k_b, (C,), minval=-wb, maxval=wb,
                                   dtype=jnp.float32)

    out = char_cnn_forward(x_idx, emb_table, conv_weight, conv_bias,
                           tile_n=tile_n, table_dtype=table_dtype)
    out = jax.block_until_ready(out)

    ref = _reference_forward(x_idx, emb_table, conv_weight, conv_bias)
    assert out.shape == (B, S, C)
    assert jnp.allclose(out, ref, atol=atol, rtol=rtol), "mismatch vs reference"


if __name__ == "__main__":
    key = jax.random.PRNGKey(0)
    k1, k2, k3 = jax.random.split(key, 3)

    # 1) Module-consistent small config, f32 table -> tight tolerance.
    _run_case(k1, V=50, E=16, C=32, B=2, S=4, W=8,
              tile_n=None, table_dtype=jnp.float32, atol=1e-5, rtol=1e-4)

    # 2) Default bf16 table, multi-step grid + ragged-N padding
    #    (N = 21 words, tile of 8 rows -> grid of 3 with 3 padded rows).
    _run_case(k2, V=97, E=24, C=48, B=3, S=7, W=16,
              tile_n=8, table_dtype=jnp.bfloat16, atol=1e-2, rtol=2e-2)

    # 3) Word length not a sublane multiple (W=11 -> padded to 16 + -inf mask).
    _run_case(k3, V=61, E=20, C=40, B=2, S=5, W=11,
              tile_n=None, table_dtype=jnp.float32, atol=1e-5, rtol=1e-4)

    print("KERNEL_OK")
</pallas_src>

<mosaic_0001>
module attributes {stable_mosaic.version = 11 : i64} {
  func.func @_char_cnn_kernel(%arg0: i32, %arg1: memref<8x8xi32, #tpu.memory_space<vmem>>, %arg2: memref<128x384xf32, #tpu.memory_space<vmem>>, %arg3: memref<1x128xf32, #tpu.memory_space<vmem>>, %arg4: memref<8x128xf32, #tpu.memory_space<vmem>>) attributes {dimension_semantics = [#tpu.dimension_semantics<parallel>], iteration_bounds = array<i64: 1>, scalar_prefetch = 0 : i64, scratch_operands = 0 : i64, tpu.core_type = #tpu.core_type<tc>, window_params = [{transform_indices = @transform_0, window_bounds = array<i64: 8, 8>}, {pipeline_mode = #tpu.pipeline_mode<synchronous>, transform_indices = @transform_1, window_bounds = array<i64: 128, 384>}, {pipeline_mode = #tpu.pipeline_mode<synchronous>, transform_indices = @transform_2, window_bounds = array<i64: 1, 128>}, {transform_indices = @transform_3, window_bounds = array<i64: 8, 128>}]} {
    %c0 = arith.constant 0 : index
    %c0_0 = arith.constant 0 : index
    %0 = vector.load %arg1[%c0, %c0_0] : memref<8x8xi32, #tpu.memory_space<vmem>>, vector<8x8xi32>
    %1 = tpu.iota {dimensions = array<i32: 2>} : vector<8x8x128xi32>
    %2 = vector.shape_cast %0 : vector<8x8xi32> to vector<8x8x1xi32>
    %3 = vector.broadcast %2 : vector<8x8x1xi32> to vector<8x8x128xi32>
    %4 = arith.cmpi eq, %1, %3 : vector<8x8x128xi32>
    %5 = arith.extui %4 : vector<8x8x128xi1> to vector<8x8x128xi32>
    %6 = arith.sitofp %5 : vector<8x8x128xi32> to vector<8x8x128xf32>
    %7 = vector.shape_cast %6 : vector<8x8x128xf32> to vector<64x128xf32>
    %c0_1 = arith.constant 0 : index
    %c0_2 = arith.constant 0 : index
    %8 = vector.load %arg2[%c0_1, %c0_2] : memref<128x384xf32, #tpu.memory_space<vmem>>, vector<128x384xf32>
    %cst = arith.constant dense<0.000000e+00> : vector<64x384xf32>
    %9 = tpu.matmul %7, %8, %cst {dimension_numbers = #tpu.dot_dimension_numbers<[1], [0], [0], [1], [0, 0, 1, 1], [], []>} : vector<64x128xf32>, vector<128x384xf32>, vector<64x384xf32> -> vector<64x384xf32>
    %10 = vector.shape_cast %9 : vector<64x384xf32> to vector<8x8x384xf32>
    %cst_3 = arith.constant 0.000000e+00 : f32
    %11 = vector.broadcast %cst_3 : f32 to vector<8x1x128xf32>
    %12 = vector.extract_strided_slice %10 {offsets = [0, 0, 0], sizes = [8, 7, 128], strides = [1, 1, 1]} : vector<8x8x384xf32> to vector<8x7x128xf32>
    %13 = tpu.concatenate %11, %12 in 1 : vector<8x1x128xf32>, vector<8x7x128xf32> -> vector<8x8x128xf32>
    %14 = vector.extract_strided_slice %10 {offsets = [0, 1, 256], sizes = [8, 7, 128], strides = [1, 1, 1]} : vector<8x8x384xf32> to vector<8x7x128xf32>
    %15 = tpu.concatenate %14, %11 in 1 : vector<8x7x128xf32>, vector<8x1x128xf32> -> vector<8x8x128xf32>
    %16 = vector.extract_strided_slice %10 {offsets = [0, 0, 128], sizes = [8, 8, 128], strides = [1, 1, 1]} : vector<8x8x384xf32> to vector<8x8x128xf32>
    %17 = arith.addf %16, %13 : vector<8x8x128xf32>
    %18 = arith.addf %17, %15 : vector<8x8x128xf32>
    %cst_4 = arith.constant dense<0xFF800000> : vector<8x128xf32>
    %19 = vector.multi_reduction <maximumf>, %18, %cst_4 [1] : vector<8x8x128xf32> to vector<8x128xf32>
    %c0_5 = arith.constant 0 : index
    %c0_6 = arith.constant 0 : index
    %20 = vector.load %arg3[%c0_5, %c0_6] : memref<1x128xf32, #tpu.memory_space<vmem>>, vector<1x128xf32>
    %21 = vector.broadcast %20 : vector<1x128xf32> to vector<8x128xf32>
    %22 = arith.addf %19, %21 : vector<8x128xf32>
    %cst_7 = arith.constant 0.000000e+00 : f32
    %23 = vector.broadcast %cst_7 : f32 to vector<8x128xf32>
    %24 = arith.maximumf %22, %23 : vector<8x128xf32>
    %c0_8 = arith.constant 0 : index
    %c0_9 = arith.constant 0 : index
    %25 = vector.load %arg4[%c0_8, %c0_9] : memref<8x128xf32, #tpu.memory_space<vmem>>, vector<8x128xf32>
    tpu.vector_store %arg4[%c0_8, %c0_9], %24 {strides = array<i32>} : memref<8x128xf32, #tpu.memory_space<vmem>>, vector<8x128xf32>,
    return
  }
  func.func @transform_0(%arg0: i32) -> (i32, i32) {
    %c0_i32 = arith.constant 0 : i32
    %c0_i32_0 = arith.constant 0 : i32
    return %arg0, %c0_i32 : i32, i32
  }
  func.func @transform_1(%arg0: i32) -> (i32, i32) {
    %c0_i32 = arith.constant 0 : i32
    %c0_i32_0 = arith.constant 0 : i32
    %c0_i32_1 = arith.constant 0 : i32
    return %c0_i32, %c0_i32_0 : i32, i32
  }
  func.func @transform_2(%arg0: i32) -> (i32, i32) {
    %c0_i32 = arith.constant 0 : i32
    %c0_i32_0 = arith.constant 0 : i32
    %c0_i32_1 = arith.constant 0 : i32
    return %c0_i32, %c0_i32_0 : i32, i32
  }
  func.func @transform_3(%arg0: i32) -> (i32, i32) {
    %c0_i32 = arith.constant 0 : i32
    %c0_i32_0 = arith.constant 0 : i32
    return %arg0, %c0_i32 : i32, i32
  }
}

</mosaic_0001>

<llo_original>
// kernel: tpu_custom_call.1
$region0: #{tpu_custom_call.1}
  #allocation0 [shape = 'u32[]', space=smem, size = 0x4, offset = 0x4, fixed_abs, tag = 'smem constant byte address 0x4 - core index']
  #allocation1 [shape = 'u32[72,128]{1,0:T(1,128)}', space=vmem, size = 0x9000, scoped, tag = 'internal scratch']
  %s0 = inlined_call_operand.hbm [shape: s32[8,8], index: 0, kind: input, shape index: {}]
  %s1 = inlined_call_operand.hbm [shape: f32[128,384], index: 1, kind: input, shape index: {}]
  %s2 = inlined_call_operand.vmem [shape: f32[1,128], index: 2, kind: input, shape index: {}]
  %s3 = inlined_call_operand.hbm [shape: f32[8,128], index: 3, kind: output, shape index: {}]
  %s4 = sld [smem:[#allocation0]]
  $region30: #{tpu_custom_call.1} parent=0
    _
  %s6 = ssub.s32 1, %s4
  %s7 = scalar_select 0, %s6, %s4
  $region1: #{tpu_custom_call.1} parent=0
    #allocation2 [shape = 'u8[4096]{0}', space=vmem, size = 0x1000, scoped, tag = 'input window, operand 0, single buffered']
    #allocation3 [shape = 's32[1]{0}', space=sflag, size = 0x4, scoped, tag = 'scoped memory for tpu_custom_call.1']
    #allocation4 [shape = 's32[1]{0}', space=sflag, size = 0x4, scoped, tag = 'scoped memory for tpu_custom_call.1']
    #allocation5 [shape = 'u8[196608]{0}', space=vmem, size = 0x30000, scoped, tag = 'input window, operand 1, single buffered']
    #allocation6 [shape = 's32[1]{0}', space=sflag, size = 0x4, scoped, tag = 'scoped memory for tpu_custom_call.1']
    #allocation7 [shape = 'u8[4096]{0}', space=vmem, size = 0x1000, scoped, tag = 'output window, operand 0, single buffered']
    %8 = vsyncpa [#allocation3], 0
    %9 = vsyncpa [#allocation6], 0
    %10 = vsyncpa [#allocation4], 0
    // Predicated region
    $region2: #{tpu_custom_call.1} parent=1 // pred_check
      _
    $region3: #{tpu_custom_call.1} parent=1 // pred_check_branch
      %12 = sbr.rel (0) target = $region5
    $region4: #{tpu_custom_call.1} parent=1 // pred_region
      %14 = vsyncadd [#allocation3], 0
      %s16 = sshll.u32 %s0, 4
      %s17 = int_to_ptr.hbm [resolvable:$true] %s16
      %s18 = sshll.u32 [#allocation2], 4
      %s19 = int_to_ptr.vmem [resolvable:$true] %s18
      %21 = dma.hbm_to_vmem [thread:$0]  %s17, 128, %s19, [#allocation3]
    $region5: #{tpu_custom_call.1} parent=1 // pred_fallthru
      _
    // Predicated region
    $region6: #{tpu_custom_call.1} parent=1 // pred_check
      _
    $region7: #{tpu_custom_call.1} parent=1 // pred_check_branch
      %23 = sbr.rel (0) target = $region9
    $region8: #{tpu_custom_call.1} parent=1 // pred_region
      %25 = vsyncadd [#allocation6], 0
      %s26 = sshll.u32 %s1, 4
      %s27 = int_to_ptr.hbm [resolvable:$true] %s26
      %s28 = sshll.u32 [#allocation5], 4
      %s29 = int_to_ptr.vmem [resolvable:$true] %s28
      %34 = dma.hbm_to_vmem [thread:$0]  %s27, 6144, %s29, [#allocation6], 384, 384, 24
    $region9: #{tpu_custom_call.1} parent=1 // pred_fallthru
      _
    // Predicated region
    $region10: #{tpu_custom_call.1} parent=1 // pred_check
      _
    $region11: #{tpu_custom_call.1} parent=1 // pred_check_branch
      %36 = sbr.rel (0) target = $region13
    $region12: #{tpu_custom_call.1} parent=1 // pred_region
      _
    $region13: #{tpu_custom_call.1} parent=1 // pred_fallthru
      _
    // Predicated region
    $region14: #{tpu_custom_call.1} parent=1 // pred_check
      _
    $region15: #{tpu_custom_call.1} parent=1 // pred_check_branch
      %38 = sbr.rel (0) target = $region17
    $region16: #{tpu_custom_call.1} parent=1 // pred_region
      %40 = dma.done [#allocation3], 128
    $region17: #{tpu_custom_call.1} parent=1 // pred_fallthru
      _
    // Predicated region
    $region18: #{tpu_custom_call.1} parent=1 // pred_check
      _
    $region19: #{tpu_custom_call.1} parent=1 // pred_check_branch
      %42 = sbr.rel (0) target = $region21
    $region20: #{tpu_custom_call.1} parent=1 // pred_region
      %44 = dma.done [#allocation6], 6144
    $region21: #{tpu_custom_call.1} parent=1 // pred_fallthru
      _
    %v45 = vld [vmem:[#allocation2] sm:$0xff]
    %v46 = vlaneseq
    %v47 = vand.u32 %v46, 127
    %v48 = vperm.slane %v45, 0
    %v49 = vlaneseq
    %v50 = vshrl.u32 %v49, 7
    %52 = vset.pattern.permute.xlu0 %v50
    %53 = vperm.xlu0 %52, %v48
    %v54 = vpop.permute.xlu0 %53
    %v55 = vperm.slane %v45, 1
    %v56 = vlaneseq
    %v57 = vshrl.u32 %v56, 7
    %59 = vset.pattern.permute.xlu0 %v57
    %60 = vperm.xlu0 %59, %v55
    %v61 = vpop.permute.xlu0 %60
    %v62 = vperm.slane %v45, 2
    %v63 = vlaneseq
    %v64 = vshrl.u32 %v63, 7
    %66 = vset.pattern.permute.xlu0 %v64
    %67 = vperm.xlu0 %66, %v62
    %v68 = vpop.permute.xlu0 %67
    %v69 = vperm.slane %v45, 3
    %v70 = vlaneseq
    %v71 = vshrl.u32 %v70, 7
    %73 = vset.pattern.permute.xlu0 %v71
    %74 = vperm.xlu0 %73, %v69
    %v75 = vpop.permute.xlu0 %74
    %v76 = vperm.slane %v45, 4
    %v77 = vlaneseq
    %v78 = vshrl.u32 %v77, 7
    %80 = vset.pattern.permute.xlu0 %v78
    %81 = vperm.xlu0 %80, %v76
    %v82 = vpop.permute.xlu0 %81
    %v83 = vperm.slane %v45, 5
    %v84 = vlaneseq
    %v85 = vshrl.u32 %v84, 7
    %87 = vset.pattern.permute.xlu0 %v85
    %88 = vperm.xlu0 %87, %v83
    %v89 = vpop.permute.xlu0 %88
    %v90 = vperm.slane %v45, 6
    %v91 = vlaneseq
    %v92 = vshrl.u32 %v91, 7
    %94 = vset.pattern.permute.xlu0 %v92
    %95 = vperm.xlu0 %94, %v90
    %v96 = vpop.permute.xlu0 %95
    %v97 = vperm.slane %v45, 7
    %v98 = vlaneseq
    %v99 = vshrl.u32 %v98, 7
    %101 = vset.pattern.permute.xlu0 %v99
    %102 = vperm.xlu0 %101, %v97
    %v103 = vpop.permute.xlu0 %102
    %vm104 = vcmp.eq.s32.totalorder %v47, %v54
    %vm105 = vcmp.eq.s32.totalorder %v47, %v61
    %vm106 = vcmp.eq.s32.totalorder %v47, %v68
    %vm107 = vcmp.eq.s32.totalorder %v47, %v75
    %vm108 = vcmp.eq.s32.totalorder %v47, %v82
    %vm109 = vcmp.eq.s32.totalorder %v47, %v89
    %vm110 = vcmp.eq.s32.totalorder %v47, %v96
    %vm111 = vcmp.eq.s32.totalorder %v47, %v103
    %v112 = vsel %vm104, 1, 0
    %v113 = vsel %vm105, 1, 0
    %v114 = vsel %vm106, 1, 0
    %v115 = vsel %vm107, 1, 0
    %v116 = vsel %vm108, 1, 0
    %v117 = vsel %vm109, 1, 0
    %v118 = vsel %vm110, 1, 0
    %v119 = vsel %vm111, 1, 0
    %v120 = vcvt.s32.f32 %v112
    %v121 = vcvt.s32.f32 %v113
    %v122 = vcvt.s32.f32 %v114
    %v123 = vcvt.s32.f32 %v115
    %v124 = vcvt.s32.f32 %v116
    %v125 = vcvt.s32.f32 %v117
    %v126 = vcvt.s32.f32 %v118
    %v127 = vcvt.s32.f32 %v119
    %v128 = vld [vmem:[#allocation5] sm:$0xff]
    %v129 = vld [vmem:[#allocation5 + $0x8] sm:$0xff]
    %v130 = vld [vmem:[#allocation5 + $0x10] sm:$0xff]
    %v131 = vld [vmem:[#allocation5 + $0x18] sm:$0xff]
    %v132 = vld [vmem:[#allocation5 + $0x20] sm:$0xff]
    %v133 = vld [vmem:[#allocation5 + $0x28] sm:$0xff]
    %v134 = vld [vmem:[#allocation5 + $0x30] sm:$0xff]
    %v135 = vld [vmem:[#allocation5 + $0x38] sm:$0xff]
    %v136 = vld [vmem:[#allocation5 + $0x40] sm:$0xff]
    %v137 = vld [vmem:[#allocation5 + $0x48] sm:$0xff]
    %v138 = vld [vmem:[#allocation5 + $0x50] sm:$0xff]
    %v139 = vld [vmem:[#allocation5 + $0x58] sm:$0xff]
    %v140 = vld [vmem:[#allocation5 + $0x60] sm:$0xff]
    %v141 = vld [vmem:[#allocation5 + $0x68] sm:$0xff]
    %v142 = vld [vmem:[#allocation5 + $0x70] sm:$0xff]
    %v143 = vld [vmem:[#allocation5 + $0x78] sm:$0xff]
    %v144 = vld [vmem:[#allocation5 + $0x80] sm:$0xff]
    %v145 = vld [vmem:[#allocation5 + $0x88] sm:$0xff]
    %v146 = vld [vmem:[#allocation5 + $0x90] sm:$0xff]
    %v147 = vld [vmem:[#allocation5 + $0x98] sm:$0xff]
    %v148 = vld [vmem:[#allocation5 + $0xa0] sm:$0xff]
    %v149 = vld [vmem:[#allocation5 + $0xa8] sm:$0xff]
    %v150 = vld [vmem:[#allocation5 + $0xb0] sm:$0xff]
    %v151 = vld [vmem:[#allocation5 + $0xb8] sm:$0xff]
    %v152 = vld [vmem:[#allocation5 + $0xc0] sm:$0xff]
    %v153 = vld [vmem:[#allocation5 + $0xc8] sm:$0xff]
    %v154 = vld [vmem:[#allocation5 + $0xd0] sm:$0xff]
    %v155 = vld [vmem:[#allocation5 + $0xd8] sm:$0xff]
    %v156 = vld [vmem:[#allocation5 + $0xe0] sm:$0xff]
    %v157 = vld [vmem:[#allocation5 + $0xe8] sm:$0xff]
    %v158 = vld [vmem:[#allocation5 + $0xf0] sm:$0xff]
    %v159 = vld [vmem:[#allocation5 + $0xf8] sm:$0xff]
    %v160 = vld [vmem:[#allocation5 + $0x100] sm:$0xff]
    %v161 = vld [vmem:[#allocation5 + $0x108] sm:$0xff]
    %v162 = vld [vmem:[#allocation5 + $0x110] sm:$0xff]
    %v163 = vld [vmem:[#allocation5 + $0x118] sm:$0xff]
    %v164 = vld [vmem:[#allocation5 + $0x120] sm:$0xff]
    %v165 = vld [vmem:[#allocation5 + $0x128] sm:$0xff]
    %v166 = vld [vmem:[#allocation5 + $0x130] sm:$0xff]
    %v167 = vld [vmem:[#allocation5 + $0x138] sm:$0xff]
    %v168 = vld [vmem:[#allocation5 + $0x140] sm:$0xff]
    %v169 = vld [vmem:[#allocation5 + $0x148] sm:$0xff]
    %v170 = vld [vmem:[#allocation5 + $0x150] sm:$0xff]
    %v171 = vld [vmem:[#allocation5 + $0x158] sm:$0xff]
    %v172 = vld [vmem:[#allocation5 + $0x160] sm:$0xff]
    %v173 = vld [vmem:[#allocation5 + $0x168] sm:$0xff]
    %v174 = vld [vmem:[#allocation5 + $0x170] sm:$0xff]
    %v175 = vld [vmem:[#allocation5 + $0x178] sm:$0xff]
    %176 = vmatpush.msra.mxu0 %v173
    %177 = vmatpush.msra.mxu0 %v170
    %178 = vmatpush.msra.mxu0 %v167
    %179 = vmatpush.msra.mxu0 %v164
    %180 = vmatpush.msra.mxu0 %v161
    %181 = vmatpush.msra.mxu0 %v158
    %182 = vmatpush.msra.mxu0 %v155
    %183 = vmatpush.msra.mxu0 %v152
    %184 = vmatpush.msra.mxu0 %v149
    %185 = vmatpush.msra.mxu0 %v146
    %186 = vmatpush.msra.mxu0 %v143
    %187 = vmatpush.msra.mxu0 %v140
    %188 = vmatpush.msra.mxu0 %v137
    %189 = vmatpush.msra.mxu0 %v134
    %190 = vmatpush.msra.mxu0 %v131
    %191 = vmatpush.msra.mxu0 %v128
    %192 = vmatmul.f32.gmra.mxu0 %v120
    %v193 = vpop.f32.mrf.mxu0
    %v194 = vadd.f32 0.0, %v193
    %195 = vmatmul.f32.gmra.mxu0 %v121
    %v196 = vpop.f32.mrf.mxu0
    %v197 = vadd.f32 0.0, %v196
    %198 = vmatmul.f32.gmra.mxu0 %v122
    %v199 = vpop.f32.mrf.mxu0
    %v200 = vadd.f32 0.0, %v199
    %201 = vmatmul.f32.gmra.mxu0 %v123
    %v202 = vpop.f32.mrf.mxu0
    %v203 = vadd.f32 0.0, %v202
    %204 = vmatmul.f32.gmra.mxu0 %v124
    %v205 = vpop.f32.mrf.mxu0
    %v206 = vadd.f32 0.0, %v205
    %207 = vmatmul.f32.gmra.mxu0 %v125
    %v208 = vpop.f32.mrf.mxu0
    %v209 = vadd.f32 0.0, %v208
    %210 = vmatmul.f32.gmra.mxu0 %v126
    %v211 = vpop.f32.mrf.mxu0
    %v212 = vadd.f32 0.0, %v211
    %213 = vmatmul.f32.gmra.mxu0 %v127
    %v214 = vpop.f32.mrf.mxu0
    %v215 = vadd.f32 0.0, %v214
    %216 = vdwg.mxu0
    %217 = vmatpush.msra.mxu0 %v174
    %218 = vmatpush.msra.mxu0 %v171
    %219 = vmatpush.msra.mxu0 %v168
    %220 = vmatpush.msra.mxu0 %v165
    %221 = vmatpush.msra.mxu0 %v162
    %222 = vmatpush.msra.mxu0 %v159
    %223 = vmatpush.msra.mxu0 %v156
    %224 = vmatpush.msra.mxu0 %v153
    %225 = vmatpush.msra.mxu0 %v150
    %226 = vmatpush.msra.mxu0 %v147
    %227 = vmatpush.msra.mxu0 %v144
    %228 = vmatpush.msra.mxu0 %v141
    %229 = vmatpush.msra.mxu0 %v138
    %230 = vmatpush.msra.mxu0 %v135
    %231 = vmatpush.msra.mxu0 %v132
    %232 = vmatpush.msra.mxu0 %v129
    %233 = vmatmul.f32.gmra.mxu0 %v120
    %v234 = vpop.f32.mrf.mxu0
    %v235 = vadd.f32 0.0, %v234
    %236 = vmatmul.f32.gmra.mxu0 %v121
    %v237 = vpop.f32.mrf.mxu0
    %v238 = vadd.f32 0.0, %v237
    %239 = vmatmul.f32.gmra.mxu0 %v122
    %v240 = vpop.f32.mrf.mxu0
    %v241 = vadd.f32 0.0, %v240
    %242 = vmatmul.f32.gmra.mxu0 %v123
    %v243 = vpop.f32.mrf.mxu0
    %v244 = vadd.f32 0.0, %v243
    %245 = vmatmul.f32.gmra.mxu0 %v124
    %v246 = vpop.f32.mrf.mxu0
    %v247 = vadd.f32 0.0, %v246
    %248 = vmatmul.f32.gmra.mxu0 %v125
    %v249 = vpop.f32.mrf.mxu0
    %v250 = vadd.f32 0.0, %v249
    %251 = vmatmul.f32.gmra.mxu0 %v126
    %v252 = vpop.f32.mrf.mxu0
    %v253 = vadd.f32 0.0, %v252
    %254 = vmatmul.f32.gmra.mxu0 %v127
    %v255 = vpop.f32.mrf.mxu0
    %v256 = vadd.f32 0.0, %v255
    %257 = vdwg.mxu0
    %258 = vmatpush.msra.mxu0 %v175
    %259 = vmatpush.msra.mxu0 %v172
    %260 = vmatpush.msra.mxu0 %v169
    %261 = vmatpush.msra.mxu0 %v166
    %262 = vmatpush.msra.mxu0 %v163
    %263 = vmatpush.msra.mxu0 %v160
    %264 = vmatpush.msra.mxu0 %v157
    %265 = vmatpush.msra.mxu0 %v154
    %266 = vmatpush.msra.mxu0 %v151
    %267 = vmatpush.msra.mxu0 %v148
    %268 = vmatpush.msra.mxu0 %v145
    %269 = vmatpush.msra.mxu0 %v142
    %270 = vmatpush.msra.mxu0 %v139
    %271 = vmatpush.msra.mxu0 %v136
    %272 = vmatpush.msra.mxu0 %v133
    %273 = vmatpush.msra.mxu0 %v130
    %274 = vmatmul.f32.gmra.mxu0 %v120
    %v275 = vpop.f32.mrf.mxu0
    %v276 = vadd.f32 0.0, %v275
    %277 = vmatmul.f32.gmra.mxu0 %v121
    %v278 = vpop.f32.mrf.mxu0
    %v279 = vadd.f32 0.0, %v278
    %280 = vmatmul.f32.gmra.mxu0 %v122
    %v281 = vpop.f32.mrf.mxu0
    %v282 = vadd.f32 0.0, %v281
    %283 = vmatmul.f32.gmra.mxu0 %v123
    %v284 = vpop.f32.mrf.mxu0
    %v285 = vadd.f32 0.0, %v284
    %286 = vmatmul.f32.gmra.mxu0 %v124
    %v287 = vpop.f32.mrf.mxu0
    %v288 = vadd.f32 0.0, %v287
    %289 = vmatmul.f32.gmra.mxu0 %v125
    %v290 = vpop.f32.mrf.mxu0
    %v291 = vadd.f32 0.0, %v290
    %292 = vmatmul.f32.gmra.mxu0 %v126
    %v293 = vpop.f32.mrf.mxu0
    %v294 = vadd.f32 0.0, %v293
    %295 = vmatmul.f32.gmra.mxu0 %v127
    %v296 = vpop.f32.mrf.mxu0
    %v297 = vadd.f32 0.0, %v296
    %298 = vdwg.mxu0
    %v307 = vrot.slane %v194, 7
    %v308 = vrot.slane %v197, 7
    %v309 = vrot.slane %v200, 7
    %v310 = vrot.slane %v203, 7
    %v311 = vrot.slane %v206, 7
    %v312 = vrot.slane %v209, 7
    %v313 = vrot.slane %v212, 7
    %v314 = vrot.slane %v215, 7
    %vm323 = vcmask 1040384
    %v324 = vsel %vm323, 0.0, %v307
    %v325 = vsel %vm323, 0.0, %v308
    %v326 = vsel %vm323, 0.0, %v309
    %v327 = vsel %vm323, 0.0, %v310
    %v328 = vsel %vm323, 0.0, %v311
    %v329 = vsel %vm323, 0.0, %v312
    %v330 = vsel %vm323, 0.0, %v313
    %v331 = vsel %vm323, 0.0, %v314
    %v340 = vrot.slane %v276, 1
    %v341 = vrot.slane %v279, 1
    %v342 = vrot.slane %v282, 1
    %v343 = vrot.slane %v285, 1
    %v344 = vrot.slane %v288, 1
    %v345 = vrot.slane %v291, 1
    %v346 = vrot.slane %v294, 1
    %v347 = vrot.slane %v297, 1
    %vm356 = vcmask 1046528
    %v357 = vsel %vm356, %v340, 0.0
    %v358 = vsel %vm356, %v341, 0.0
    %v359 = vsel %vm356, %v342, 0.0
    %v360 = vsel %vm356, %v343, 0.0
    %v361 = vsel %vm356, %v344, 0.0
    %v362 = vsel %vm356, %v345, 0.0
    %v363 = vsel %vm356, %v346, 0.0
    %v364 = vsel %vm356, %v347, 0.0
    %v365 = vadd.f32 %v235, %v324
    %v366 = vadd.f32 %v238, %v325
    %v367 = vadd.f32 %v241, %v326
    %v368 = vadd.f32 %v244, %v327
    %v369 = vadd.f32 %v247, %v328
    %v370 = vadd.f32 %v250, %v329
    %v371 = vadd.f32 %v253, %v330
    %v372 = vadd.f32 %v256, %v331
    %v373 = vadd.f32 %v365, %v357
    %v374 = vadd.f32 %v366, %v358
    %v375 = vadd.f32 %v367, %v359
    %v376 = vadd.f32 %v368, %v360
    %v377 = vadd.f32 %v369, %v361
    %v378 = vadd.f32 %v370, %v362
    %v379 = vadd.f32 %v371, %v363
    %v380 = vadd.f32 %v372, %v364
    %v381 = vrot.slane %v373, 4
    %v382 = vmax.f32 %v373, %v381
    %v383 = vrot.slane %v382, 2
    %v384 = vmax.f32 %v382, %v383
    %v385 = vrot.slane %v384, 1
    %v386 = vmax.f32 %v384, %v385
    %v387 = vrot.slane %v374, 4
    %v388 = vmax.f32 %v374, %v387
    %v389 = vrot.slane %v388, 2
    %v390 = vmax.f32 %v388, %v389
    %v391 = vrot.slane %v390, 1
    %v392 = vmax.f32 %v390, %v391
    %v393 = vrot.slane %v375, 4
    %v394 = vmax.f32 %v375, %v393
    %v395 = vrot.slane %v394, 2
    %v396 = vmax.f32 %v394, %v395
    %v397 = vrot.slane %v396, 1
    %v398 = vmax.f32 %v396, %v397
    %v399 = vrot.slane %v376, 4
    %v400 = vmax.f32 %v376, %v399
    %v401 = vrot.slane %v400, 2
    %v402 = vmax.f32 %v400, %v401
    %v403 = vrot.slane %v402, 1
    %v404 = vmax.f32 %v402, %v403
    %v405 = vrot.slane %v377, 4
    %v406 = vmax.f32 %v377, %v405
    %v407 = vrot.slane %v406, 2
    %v408 = vmax.f32 %v406, %v407
    %v409 = vrot.slane %v408, 1
    %v410 = vmax.f32 %v408, %v409
    %v411 = vrot.slane %v378, 4
    %v412 = vmax.f32 %v378, %v411
    %v413 = vrot.slane %v412, 2
    %v414 = vmax.f32 %v412, %v413
    %v415 = vrot.slane %v414, 1
    %v416 = vmax.f32 %v414, %v415
    %v417 = vrot.slane %v379, 4
    %v418 = vmax.f32 %v379, %v417
    %v419 = vrot.slane %v418, 2
    %v420 = vmax.f32 %v418, %v419
    %v421 = vrot.slane %v420, 1
    %v422 = vmax.f32 %v420, %v421
    %v423 = vrot.slane %v380, 4
    %v424 = vmax.f32 %v380, %v423
    %v425 = vrot.slane %v424, 2
    %v426 = vmax.f32 %v424, %v425
    %v427 = vrot.slane %v426, 1
    %v428 = vmax.f32 %v426, %v427
    %v429 = vld [vmem:[%s2] sm:$0x1]
    %v431 = vperm.slane %v429, 0
    %v433 = vadd.f32 %v386, %v431
    %v434 = vadd.f32 %v392, %v431
    %v435 = vadd.f32 %v398, %v431
    %v436 = vadd.f32 %v404, %v431
    %v437 = vadd.f32 %v410, %v431
    %v438 = vadd.f32 %v416, %v431
    %v439 = vadd.f32 %v422, %v431
    %v440 = vadd.f32 %v428, %v431
    %v441 = vmax.f32 %v433, 0.0
    %v442 = vmax.f32 %v434, 0.0
    %v443 = vmax.f32 %v435, 0.0
    %v444 = vmax.f32 %v436, 0.0
    %v445 = vmax.f32 %v437, 0.0
    %v446 = vmax.f32 %v438, 0.0
    %v447 = vmax.f32 %v439, 0.0
    %v448 = vmax.f32 %v440, 0.0
    %v457 = vrot.slane %v442, 7
    %vm458 = vcmask 1041409
    %v459 = vsel %vm458, %v457, %v441
    %v460 = vrot.slane %v443, 6
    %vm461 = vcmask 1042434
    %v462 = vsel %vm461, %v460, %v459
    %v463 = vrot.slane %v444, 5
    %vm464 = vcmask 1043459
    %v465 = vsel %vm464, %v463, %v462
    %v466 = vrot.slane %v445, 4
    %vm467 = vcmask 1044484
    %v468 = vsel %vm467, %v466, %v465
    %v469 = vrot.slane %v446, 3
    %vm470 = vcmask 1045509
    %v471 = vsel %vm470, %v469, %v468
    %v472 = vrot.slane %v447, 2
    %vm473 = vcmask 1046534
    %v474 = vsel %vm473, %v472, %v471
    %v475 = vrot.slane %v448, 1
    %vm476 = vcmask 1047559
    %v477 = vsel %vm476, %v475, %v474
    %479 = vst [vmem:[#allocation7] sm:$0xff] %v477
    // Predicated region
    $region22: #{tpu_custom_call.1} parent=1 // pred_check
      _
    $region23: #{tpu_custom_call.1} parent=1 // pred_check_branch
      %481 = sbr.rel (0) target = $region25
    $region24: #{tpu_custom_call.1} parent=1 // pred_region
      %483 = vsyncadd [#allocation4], 0
      %s485 = sshll.u32 [#allocation7], 4
      %s486 = int_to_ptr.vmem [resolvable:$true] %s485
      %s487 = sshll.u32 %s3, 4
      %s488 = int_to_ptr.hbm [resolvable:$true] %s487
      %490 = dma.vmem_to_hbm [thread:$0]  %s486, 128, %s488, [#allocation4]
    $region25: #{tpu_custom_call.1} parent=1 // pred_fallthru
      _
    // Predicated region
    $region26: #{tpu_custom_call.1} parent=1 // pred_check
      _
    $region27: #{tpu_custom_call.1} parent=1 // pred_check_branch
      %492 = sbr.rel (0) target = $region29
    $region28: #{tpu_custom_call.1} parent=1 // pred_region
      %494 = dma.done [#allocation4], 128
    $region29: #{tpu_custom_call.1} parent=1 // pred_fallthru
      _
    %495 = vsyncpa [#allocation3], 1
    %496 = vsyncpa [#allocation6], 1
    %497 = vsyncpa [#allocation4], 1

</llo_original>
